<compile_context>
chip_gen: v7x
topology: tpu7x:2x2x1
jax: 0.10.0
libtpu: 0.0.40
codegen_flags: <defaults>
</compile_context>

<pallas_src>
import functools

import jax
import jax.numpy as jnp
from jax.experimental import pallas as pl
from jax.experimental.pallas import tpu as pltpu


_LANES = 512           # lane-dense width (multiple of 128)
_MAX_ROW_TILE = 1024   # up to ~2 MiB f32 per input per grid step
_ROW_ALIGN = 16        # sublane-safe for f32 and bf16 inputs
_MAX_PARTIALS = 2      # leading "parallel" axis -> both TCs on dual-core chips


def _kld_kernel(mu_ref, logvar_ref, out_ref, acc_ref, *, scale):
    # Grid axes: (partial "parallel" axis, reduction "arbitrary" axis).
    i = pl.program_id(1)

    @pl.when(i == 0)
    def _():
        acc_ref[...] = jnp.zeros_like(acc_ref)

    mu = mu_ref[...].astype(jnp.float32)
    lv = logvar_ref[...].astype(jnp.float32)
    term = 1.0 + lv - mu * mu - jnp.exp(lv)

    t, w = term.shape  # t % 8 == 0, w % 128 == 0 by construction
    # Fold row-groups of 8 into the (8, W) accumulator: reduction over the
    # leading (major) axis only -> pure VPU adds, no cross-lane/XLU work per
    # step, and it hides entirely under the input DMA (kernel is mem-bound).
    acc_ref[...] += jnp.sum(term.reshape(t // 8, 8, w), axis=0)

    @pl.when(i == pl.num_programs(1) - 1)
    def _():
        # One cross-lane reduce per partial; fold in the -0.5 / numel scale.
        out_ref[0, 0] = jnp.sum(acc_ref[...]) * scale


def _round_up(x, m):
    return ((x + m - 1) // m) * m


def kld_loss(mu, logvar):
    """VAE KL divergence: -0.5 * sum(1 + logvar - mu^2 - exp(logvar)) / numel.

    mu, logvar: arrays of identical shape (any rank, f32 or bf16).
    Returns a scalar float32.
    """
    assert mu.shape == logvar.shape
    numel = mu.size

    flat_mu = mu.reshape(-1)
    flat_lv = logvar.reshape(-1)

    w = _LANES
    rows = pl.cdiv(numel, w)
    # Split across both TensorCores (v7x) only when there is enough work;
    # otherwise keep a single partial to avoid a fully-padded dummy block.
    num_partials = _MAX_PARTIALS if rows >= _MAX_PARTIALS * _ROW_ALIGN else 1
    # Row tile: big enough to amortize per-step overhead, small enough to
    # double-buffer comfortably in scoped VMEM on every generation (incl. v7x).
    row_tile = min(_MAX_ROW_TILE,
                   _round_up(pl.cdiv(rows, num_partials), _ROW_ALIGN))
    blocks = pl.cdiv(rows, row_tile * num_partials)
    rows_total = num_partials * blocks * row_tile
    padded = rows_total * w

    if padded != numel:
        # Zero padding contributes exactly 0 to the KLD sum.
        flat_mu = jnp.pad(flat_mu, (0, padded - numel))
        flat_lv = jnp.pad(flat_lv, (0, padded - numel))
    mu2 = flat_mu.reshape(rows_total, w)
    lv2 = flat_lv.reshape(rows_total, w)

    itemsize = jnp.dtype(mu2.dtype).itemsize
    block_bytes = row_tile * w * itemsize
    # 2 inputs x 2 pipeline buffers x block, plus scratch/output + headroom.
    vmem_limit = min(int(4 * block_bytes + (8 << 20)), 100 << 20)

    kernel = functools.partial(_kld_kernel, scale=float(-0.5 / numel))

    partials = pl.pallas_call(
        kernel,
        out_shape=jax.ShapeDtypeStruct((num_partials, 1), jnp.float32),
        grid_spec=pltpu.PrefetchScalarGridSpec(
            num_scalar_prefetch=0,
            grid=(num_partials, blocks),
            in_specs=[
                pl.BlockSpec((row_tile, w), lambda p, i: (p * blocks + i, 0)),
                pl.BlockSpec((row_tile, w), lambda p, i: (p * blocks + i, 0)),
            ],
            out_specs=pl.BlockSpec(
                (1, 1), lambda p, i: (p, 0), memory_space=pltpu.SMEM
            ),
            scratch_shapes=[pltpu.VMEM((8, w), jnp.float32)],
        ),
        compiler_params=pltpu.CompilerParams(
            dimension_semantics=("parallel", "arbitrary"),
            vmem_limit_bytes=vmem_limit,
        ),
        cost_estimate=pl.CostEstimate(
            flops=6 * padded,
            transcendentals=padded,
            bytes_accessed=2 * padded * itemsize + 4 * num_partials,
        ),
    )(mu2, lv2)

    # Each partial already carries the -0.5/numel scale, so a plain sum of the
    # (at most 2) per-core partials gives the final loss.
    return jnp.sum(partials)


if __name__ == "__main__":
    key = jax.random.PRNGKey(0)
    k_mu, k_lv = jax.random.split(key)
    B, D = 8, 32
    mu = jax.random.normal(k_mu, (B, D), dtype=jnp.float32)
    logvar = jax.random.normal(k_lv, (B, D), dtype=jnp.float32)

    loss = kld_loss(mu, logvar)
    jax.block_until_ready(loss)

    # Pure-JAX reference for sanity checking.
    ref = (-0.5 * jnp.sum(1.0 + logvar - mu**2 - jnp.exp(logvar))) / mu.size
    assert jnp.allclose(loss, ref, rtol=1e-5, atol=1e-5), (loss, ref)

    print("KERNEL_OK")
</pallas_src>

<mosaic_0001>
module attributes {stable_mosaic.version = 11 : i64} {
  func.func @_kld_kernel(%arg0: i32, %arg1: i32, %arg2: memref<16x512xf32, #tpu.memory_space<vmem>>, %arg3: memref<16x512xf32, #tpu.memory_space<vmem>>, %arg4: memref<1x1xf32, #tpu.memory_space<smem>>, %arg5: memref<8x512xf32, #tpu.memory_space<vmem>>) attributes {dimension_semantics = [#tpu.dimension_semantics<parallel>, #tpu.dimension_semantics<arbitrary>], iteration_bounds = array<i64: 1, 1>, scalar_prefetch = 0 : i64, scratch_operands = 1 : i64, tpu.core_type = #tpu.core_type<tc>, window_params = [{transform_indices = @transform_0, window_bounds = array<i64: 16, 512>}, {transform_indices = @transform_1, window_bounds = array<i64: 16, 512>}, {transform_indices = @transform_2, window_bounds = array<i64: 1, 1>}]} {
    %c0_i32 = arith.constant 0 : i32
    %0 = arith.cmpi eq, %arg1, %c0_i32 : i32
    %1 = arith.extui %0 : i1 to i32
    %c0_i32_0 = arith.constant 0 : i32
    %2 = arith.cmpi ne, %1, %c0_i32_0 : i32
    scf.if %2 {
      %cst_11 = arith.constant 0.000000e+00 : f32
      %19 = vector.broadcast %cst_11 : f32 to vector<8x512xf32>
      %c0_12 = arith.constant 0 : index
      %c0_13 = arith.constant 0 : index
      %20 = vector.load %arg5[%c0_12, %c0_13] : memref<8x512xf32, #tpu.memory_space<vmem>>, vector<8x512xf32>
      tpu.vector_store %arg5[%c0_12, %c0_13], %19 {strides = array<i32>} : memref<8x512xf32, #tpu.memory_space<vmem>>, vector<8x512xf32>,
    } else {
    }
    %c0 = arith.constant 0 : index
    %c0_1 = arith.constant 0 : index
    %3 = vector.load %arg2[%c0, %c0_1] : memref<16x512xf32, #tpu.memory_space<vmem>>, vector<16x512xf32>
    %c0_2 = arith.constant 0 : index
    %c0_3 = arith.constant 0 : index
    %4 = vector.load %arg3[%c0_2, %c0_3] : memref<16x512xf32, #tpu.memory_space<vmem>>, vector<16x512xf32>
    %cst = arith.constant 1.000000e+00 : f32
    %5 = vector.broadcast %cst : f32 to vector<16x512xf32>
    %6 = arith.addf %5, %4 : vector<16x512xf32>
    %7 = arith.mulf %3, %3 : vector<16x512xf32>
    %8 = arith.subf %6, %7 : vector<16x512xf32>
    %9 = math.exp %4 : vector<16x512xf32>
    %10 = arith.subf %8, %9 : vector<16x512xf32>
    %c0_4 = arith.constant 0 : index
    %c0_5 = arith.constant 0 : index
    %11 = vector.load %arg5[%c0_4, %c0_5] : memref<8x512xf32, #tpu.memory_space<vmem>>, vector<8x512xf32>
    %12 = vector.shape_cast %10 : vector<16x512xf32> to vector<2x8x512xf32>
    %cst_6 = arith.constant dense<0.000000e+00> : vector<8x512xf32>
    %13 = vector.multi_reduction <add>, %12, %cst_6 [0] : vector<2x8x512xf32> to vector<8x512xf32>
    %14 = arith.addf %11, %13 : vector<8x512xf32>
    %c0_7 = arith.constant 0 : index
    %c0_8 = arith.constant 0 : index
    %15 = vector.load %arg5[%c0_7, %c0_8] : memref<8x512xf32, #tpu.memory_space<vmem>>, vector<8x512xf32>
    tpu.vector_store %arg5[%c0_7, %c0_8], %14 {strides = array<i32>} : memref<8x512xf32, #tpu.memory_space<vmem>>, vector<8x512xf32>,
    %c0_i32_9 = arith.constant 0 : i32
    %16 = arith.cmpi eq, %arg1, %c0_i32_9 : i32
    %17 = arith.extui %16 : i1 to i32
    %c0_i32_10 = arith.constant 0 : i32
    %18 = arith.cmpi ne, %17, %c0_i32_10 : i32
    scf.if %18 {
      %c0_11 = arith.constant 0 : index
      %c0_12 = arith.constant 0 : index
      %19 = vector.load %arg5[%c0_11, %c0_12] : memref<8x512xf32, #tpu.memory_space<vmem>>, vector<8x512xf32>
      %20 = vector.shape_cast %19 : vector<8x512xf32> to vector<1x8x512xf32>
      %cst_13 = arith.constant dense<0.000000e+00> : vector<1xf32>
      %21 = vector.multi_reduction <add>, %20, %cst_13 [1, 2] : vector<1x8x512xf32> to vector<1xf32>
      %22 = vector.shape_cast %21 : vector<1xf32> to vector<1x1x1xf32>
      %23 = vector.extract %22[0, 0, 0] : f32 from vector<1x1x1xf32>
      %cst_14 = arith.constant -0.001953125 : f32
      %24 = arith.mulf %23, %cst_14 : f32
      %c0_15 = arith.constant 0 : index
      %c0_16 = arith.constant 0 : index
      %25 = memref.load %arg4[%c0_15, %c0_16] : memref<1x1xf32, #tpu.memory_space<smem>>
      memref.store %24, %arg4[%c0_15, %c0_16] : memref<1x1xf32, #tpu.memory_space<smem>>
    } else {
    }
    return
  }
  func.func @transform_0(%arg0: i32, %arg1: i32) -> (i32, i32) {
    %c1_i32 = arith.constant 1 : i32
    %0 = arith.muli %arg0, %c1_i32 : i32
    %1 = arith.addi %0, %arg1 : i32
    %c0_i32 = arith.constant 0 : i32
    %c0_i32_0 = arith.constant 0 : i32
    return %1, %c0_i32 : i32, i32
  }
  func.func @transform_1(%arg0: i32, %arg1: i32) -> (i32, i32) {
    %c1_i32 = arith.constant 1 : i32
    %0 = arith.muli %arg0, %c1_i32 : i32
    %1 = arith.addi %0, %arg1 : i32
    %c0_i32 = arith.constant 0 : i32
    %c0_i32_0 = arith.constant 0 : i32
    return %1, %c0_i32 : i32, i32
  }
  func.func @transform_2(%arg0: i32, %arg1: i32) -> (i32, i32) {
    %c0_i32 = arith.constant 0 : i32
    %c0_i32_0 = arith.constant 0 : i32
    return %arg0, %c0_i32 : i32, i32
  }
}

</mosaic_0001>

<llo_original>
// kernel: tpu_custom_call.1
$region0: #{tpu_custom_call.1}
  #allocation0 [shape = 'u32[]', space=smem, size = 0x4, offset = 0x4, fixed_abs, tag = 'smem constant byte address 0x4 - core index']
  #allocation1 [shape = 'u32[144,128]{1,0:T(1,128)}', space=vmem, size = 0x12000, scoped, tag = 'internal scratch']
  #allocation2 [shape = 'f32[8,512]{1,0:T(8,128)}', space=vmem, size = 0x4000, scoped, tag = 'scratch operand']
  %s0 = inlined_call_operand.hbm [shape: f32[16,512], index: 0, kind: input, shape index: {}]
  %s1 = inlined_call_operand.hbm [shape: f32[16,512], index: 1, kind: input, shape index: {}]
  %s2 = inlined_call_operand.hbm [shape: f32[1,1], index: 2, kind: output, shape index: {}]
  %s3 = sld [smem:[#allocation0]]
  $region34: #{tpu_custom_call.1} parent=0
    _
  %s5 = ssub.s32 1, %s3
  %s6 = scalar_select 0, %s5, %s3
  $region1: #{tpu_custom_call.1} parent=0
    #allocation3 [shape = 'u8[32768]{0}', space=vmem, size = 0x8000, scoped, tag = 'input window, operand 0, single buffered']
    #allocation4 [shape = 's32[1]{0}', space=sflag, size = 0x4, scoped, tag = 'scoped memory for tpu_custom_call.1']
    #allocation5 [shape = 's32[1]{0}', space=sflag, size = 0x4, scoped, tag = 'scoped memory for tpu_custom_call.1']
    #allocation6 [shape = 'u8[32768]{0}', space=vmem, size = 0x8000, scoped, tag = 'input window, operand 1, single buffered']
    #allocation7 [shape = 's32[1]{0}', space=sflag, size = 0x4, scoped, tag = 'scoped memory for tpu_custom_call.1']
    #allocation8 [shape = 'u8[512]{0}', space=smem, size = 0x200, scoped, tag = 'output window, operand 0, single buffered']
    %7 = vsyncpa [#allocation4], 0
    %8 = vsyncpa [#allocation7], 0
    %9 = vsyncpa [#allocation5], 0
    // Predicated region
    $region2: #{tpu_custom_call.1} parent=1 // pred_check
      _
    $region3: #{tpu_custom_call.1} parent=1 // pred_check_branch
      %11 = sbr.rel (0) target = $region5
    $region4: #{tpu_custom_call.1} parent=1 // pred_region
      %s12 = sadd.s32 0, 0
      %s13 = smul.u32 2, %s12
      %s15 = ssub.s32 1024, 1024
      %16 = vsyncadd [#allocation4], %s15
      %s17 = smul.addr %s13, 4
      %s18 = smul.addr %s17, 128
      %s19 = scalar_lea.hbm %s0, %s18
      %s20 = sshll.u32 [#allocation3], 4
      %s21 = int_to_ptr.vmem [resolvable:$true] %s20
      %26 = dma.hbm_to_vmem [thread:$0]  %s19, 1024, %s21, [#allocation4], 512, 512, 32
    $region5: #{tpu_custom_call.1} parent=1 // pred_fallthru
      _
    // Predicated region
    $region6: #{tpu_custom_call.1} parent=1 // pred_check
      _
    $region7: #{tpu_custom_call.1} parent=1 // pred_check_branch
      %28 = sbr.rel (0) target = $region9
    $region8: #{tpu_custom_call.1} parent=1 // pred_region
      %s29 = sadd.s32 0, 0
      %s30 = smul.u32 2, %s29
      %s32 = ssub.s32 1024, 1024
      %33 = vsyncadd [#allocation7], %s32
      %s34 = smul.addr %s30, 4
      %s35 = smul.addr %s34, 128
      %s36 = scalar_lea.hbm %s1, %s35
      %s37 = sshll.u32 [#allocation6], 4
      %s38 = int_to_ptr.vmem [resolvable:$true] %s37
      %43 = dma.hbm_to_vmem [thread:$0]  %s36, 1024, %s38, [#allocation7], 512, 512, 32
    $region9: #{tpu_custom_call.1} parent=1 // pred_fallthru
      _
    // Predicated region
    $region10: #{tpu_custom_call.1} parent=1 // pred_check
      _
    $region11: #{tpu_custom_call.1} parent=1 // pred_check_branch
      %45 = sbr.rel (0) target = $region13
    $region12: #{tpu_custom_call.1} parent=1 // pred_region
      %46 = dma.done [#allocation4], 1024
    $region13: #{tpu_custom_call.1} parent=1 // pred_fallthru
      _
    // Predicated region
    $region14: #{tpu_custom_call.1} parent=1 // pred_check
      _
    $region15: #{tpu_custom_call.1} parent=1 // pred_check_branch
      %48 = sbr.rel (0) target = $region17
    $region16: #{tpu_custom_call.1} parent=1 // pred_region
      %49 = dma.done [#allocation7], 1024
    $region17: #{tpu_custom_call.1} parent=1 // pred_fallthru
      _
    %s50 = sadd.s32 0, 0
    %s51 = smul.u32 2, %s50
    %s52 = sadd.s32 0, 0
    %s53 = smul.u32 2, %s52
    %p54 = scmp.eq.s32.totalorder 0, 0
    // Predicated region
    $region18: #{tpu_custom_call.1} parent=1 // pred_check
      %p55 = pneg %p54
    $region19: #{tpu_custom_call.1} parent=1 // pred_check_branch
      %57 = sbr.rel (%p55) target = $region21
    $region20: #{tpu_custom_call.1} parent=1 // pred_region
      %58 = vst [vmem:[#allocation2] sm:$0xff] 0.0
      %59 = vst [vmem:[#allocation2 + $0x8] sm:$0xff] 0.0
      %60 = vst [vmem:[#allocation2 + $0x10] sm:$0xff] 0.0
      %61 = vst [vmem:[#allocation2 + $0x18] sm:$0xff] 0.0
    $region21: #{tpu_custom_call.1} parent=1 // pred_fallthru
      _
    %v62 = vld [vmem:[#allocation3] sm:$0xff]
    %v63 = vld [vmem:[#allocation3 + $0x8] sm:$0xff]
    %v64 = vld [vmem:[#allocation3 + $0x10] sm:$0xff]
    %v65 = vld [vmem:[#allocation3 + $0x18] sm:$0xff]
    %v66 = vld [vmem:[#allocation3 + $0x20] sm:$0xff]
    %v67 = vld [vmem:[#allocation3 + $0x28] sm:$0xff]
    %v68 = vld [vmem:[#allocation3 + $0x30] sm:$0xff]
    %v69 = vld [vmem:[#allocation3 + $0x38] sm:$0xff]
    %v70 = vld [vmem:[#allocation6] sm:$0xff]
    %v71 = vld [vmem:[#allocation6 + $0x8] sm:$0xff]
    %v72 = vld [vmem:[#allocation6 + $0x10] sm:$0xff]
    %v73 = vld [vmem:[#allocation6 + $0x18] sm:$0xff]
    %v74 = vld [vmem:[#allocation6 + $0x20] sm:$0xff]
    %v75 = vld [vmem:[#allocation6 + $0x28] sm:$0xff]
    %v76 = vld [vmem:[#allocation6 + $0x30] sm:$0xff]
    %v77 = vld [vmem:[#allocation6 + $0x38] sm:$0xff]
    %v78 = vadd.f32 %v70, 1.0
    %v79 = vadd.f32 %v71, 1.0
    %v80 = vadd.f32 %v72, 1.0
    %v81 = vadd.f32 %v73, 1.0
    %v82 = vadd.f32 %v74, 1.0
    %v83 = vadd.f32 %v75, 1.0
    %v84 = vadd.f32 %v76, 1.0
    %v85 = vadd.f32 %v77, 1.0
    %v86 = vmul.f32 %v62, %v62
    %v87 = vmul.f32 %v63, %v63
    %v88 = vmul.f32 %v64, %v64
    %v89 = vmul.f32 %v65, %v65
    %v90 = vmul.f32 %v66, %v66
    %v91 = vmul.f32 %v67, %v67
    %v92 = vmul.f32 %v68, %v68
    %v93 = vmul.f32 %v69, %v69
    %v94 = vsub.f32 %v78, %v86
    %v95 = vsub.f32 %v79, %v87
    %v96 = vsub.f32 %v80, %v88
    %v97 = vsub.f32 %v81, %v89
    %v98 = vsub.f32 %v82, %v90
    %v99 = vsub.f32 %v83, %v91
    %v100 = vsub.f32 %v84, %v92
    %v101 = vsub.f32 %v85, %v93
    %v102 = vmul.f32 %v70, 1.442695
    %v103 = vpow.pop %v102
    %v104 = vmul.f32 %v71, 1.442695
    %v105 = vpow.pop %v104
    %v106 = vmul.f32 %v72, 1.442695
    %v107 = vpow.pop %v106
    %v108 = vmul.f32 %v73, 1.442695
    %v109 = vpow.pop %v108
    %v110 = vmul.f32 %v74, 1.442695
    %v111 = vpow.pop %v110
    %v112 = vmul.f32 %v75, 1.442695
    %v113 = vpow.pop %v112
    %v114 = vmul.f32 %v76, 1.442695
    %v115 = vpow.pop %v114
    %v116 = vmul.f32 %v77, 1.442695
    %v117 = vpow.pop %v116
    %v118 = vsub.f32 %v94, %v103
    %v119 = vsub.f32 %v95, %v105
    %v120 = vsub.f32 %v96, %v107
    %v121 = vsub.f32 %v97, %v109
    %v122 = vsub.f32 %v98, %v111
    %v123 = vsub.f32 %v99, %v113
    %v124 = vsub.f32 %v100, %v115
    %v125 = vsub.f32 %v101, %v117
    %v126 = vld [vmem:[#allocation2] sm:$0xff]
    %v127 = vld [vmem:[#allocation2 + $0x8] sm:$0xff]
    %v128 = vld [vmem:[#allocation2 + $0x10] sm:$0xff]
    %v129 = vld [vmem:[#allocation2 + $0x18] sm:$0xff]
    %v130 = vadd.f32 %v118, %v122
    %v131 = vadd.f32 %v119, %v123
    %v132 = vadd.f32 %v120, %v124
    %v133 = vadd.f32 %v121, %v125
    %v134 = vadd.f32 %v126, %v130
    %v135 = vadd.f32 %v127, %v131
    %v136 = vadd.f32 %v128, %v132
    %v137 = vadd.f32 %v129, %v133
    %138 = vst [vmem:[#allocation2] sm:$0xff] %v134
    %139 = vst [vmem:[#allocation2 + $0x8] sm:$0xff] %v135
    %140 = vst [vmem:[#allocation2 + $0x10] sm:$0xff] %v136
    %141 = vst [vmem:[#allocation2 + $0x18] sm:$0xff] %v137
    // Predicated region
    $region22: #{tpu_custom_call.1} parent=1 // pred_check
      %p142 = pneg %p54
    $region23: #{tpu_custom_call.1} parent=1 // pred_check_branch
      %144 = sbr.rel (%p142) target = $region25
    $region24: #{tpu_custom_call.1} parent=1 // pred_region
      %v145 = vld [vmem:[#allocation2] sm:$0xff]
      %v146 = vld [vmem:[#allocation2 + $0x8] sm:$0xff]
      %v147 = vld [vmem:[#allocation2 + $0x10] sm:$0xff]
      %v148 = vld [vmem:[#allocation2 + $0x18] sm:$0xff]
      %v149 = vadd.f32 %v145, %v146
      %v150 = vadd.f32 %v149, %v147
      %v151 = vadd.f32 %v150, %v148
      %152 = vadd.xlane.f32.xlu0 %v151
      %v153 = vpop.xlane.xlu0 %152
      %v154 = vrot.slane %v153, 4
      %v155 = vadd.f32 %v153, %v154
      %v156 = vrot.slane %v155, 2
      %v157 = vadd.f32 %v155, %v156
      %v158 = vrot.slane %v157, 1
      %v159 = vadd.f32 %v157, %v158
      %s160 = vtos %v159
      %s161 = smul.f32 %s160, -0.001953125
      %s162 = scalar_lea.smem [#allocation8], 0
      %163 = sst [smem:[%s162]] %s161
    $region25: #{tpu_custom_call.1} parent=1 // pred_fallthru
      _
    // Predicated region
    $region26: #{tpu_custom_call.1} parent=1 // pred_check
      _
    $region27: #{tpu_custom_call.1} parent=1 // pred_check_branch
      %165 = sbr.rel (0) target = $region29
    $region28: #{tpu_custom_call.1} parent=1 // pred_region
      %s167 = ssub.s32 16, 16
      %168 = vsyncadd [#allocation5], %s167
      %171 = dma.smem_to_hbm [#allocation8], 16, %s2, [#allocation5]
    $region29: #{tpu_custom_call.1} parent=1 // pred_fallthru
      _
    // Predicated region
    $region30: #{tpu_custom_call.1} parent=1 // pred_check
      _
    $region31: #{tpu_custom_call.1} parent=1 // pred_check_branch
      %173 = sbr.rel (0) target = $region33
    $region32: #{tpu_custom_call.1} parent=1 // pred_region
      %174 = dma.done [#allocation5], 16
    $region33: #{tpu_custom_call.1} parent=1 // pred_fallthru
      _
    %175 = sfence
    %176 = vsyncpa [#allocation4], 1
    %177 = vsyncpa [#allocation7], 1
    %178 = vsyncpa [#allocation5], 1

</llo_original>
